<compile_context>
chip_gen: v5e
topology: v5e:2x2
jax: 0.10.0
libtpu: 0.0.40
codegen_flags: <defaults>
</compile_context>

<pallas_src>
import functools

import jax
import jax.numpy as jnp
from jax import lax
from jax.experimental import pallas as pl
from jax.experimental.pallas import tpu as pltpu


def _round_up(x, m):
    return ((x + m - 1) // m) * m


def _vmem_capacity_bytes():
    """Physical VMEM of the local TPU; conservative fallback if unavailable."""
    try:
        cap = getattr(pltpu.get_tpu_info(), "vmem_capacity_bytes", None)
        if cap:
            return int(cap)
    except Exception:
        pass
    return 64 * 1024 * 1024  # v7x physical VMEM -> safe everywhere


def _contrastive_loss_kernel(
    x1_ref, x2_ref, t_ref, out_ref, *, margin, dist_metric, batch, block_rows
):
    """One batch tile -> one partial loss sum.

    x1_ref, x2_ref : (TB, D) embeddings (any float dtype, upcast to f32)
    t_ref          : (TB, 1) target labels (0 = similar, 1 = dissimilar)
    out_ref        : (1, 8, 128) partial sum of per-row losses for this tile
                     (same scalar broadcast across the block; lane-dense store).
    """
    x1 = x1_ref[...].astype(jnp.float32)
    x2 = x2_ref[...].astype(jnp.float32)
    t = t_ref[...].astype(jnp.float32)  # (TB, 1)

    if dist_metric == "euclidean":
        # torch.nn.functional.pairwise_distance: ||x1 - x2 + eps||_2, eps=1e-6.
        diff = x1 - x2 + 1e-6
        sq = jnp.sum(diff * diff, axis=-1, keepdims=True)  # (TB, 1) == d^2
        dist = jnp.sqrt(sq)
        hinge = jnp.maximum(margin - dist, 0.0)
        # Reuse sq directly for the d^2 term (no sqrt -> square round trip).
        loss = 0.5 * (1.0 - t) * sq + 0.5 * t * (hinge * hinge)
    elif dist_metric == "cosine":
        # torch.nn.functional.cosine_similarity:
        #   x1.x2 / max(||x1||*||x2||, eps), eps=1e-8
        # Implemented as dot * rsqrt(max(s1*s2, eps^2)) -> one EUP rsqrt.
        eps = 1e-8
        dot = jnp.sum(x1 * x2, axis=-1, keepdims=True)
        s1 = jnp.sum(x1 * x1, axis=-1, keepdims=True)
        s2 = jnp.sum(x2 * x2, axis=-1, keepdims=True)
        dist = dot * lax.rsqrt(jnp.maximum(s1 * s2, eps * eps))  # (TB, 1)
        hinge = jnp.maximum(margin - dist, 0.0)
        loss = 0.5 * (1.0 - t) * (dist * dist) + 0.5 * t * (hinge * hinge)
    else:
        raise ValueError(f"unknown dist_metric: {dist_metric}")

    # Ragged last tile: rows >= batch hold undefined data -> zero them before
    # the partial sum.  Only emitted when the grid is actually ragged.
    if batch % block_rows != 0:
        row = pl.program_id(0) * block_rows + lax.broadcasted_iota(
            jnp.int32, loss.shape, 0
        )
        loss = jnp.where(row < batch, loss, 0.0)

    partial = jnp.sum(loss, axis=0, keepdims=True)  # (1, 1)
    out_ref[...] = jnp.broadcast_to(partial.reshape(1, 1, 1), out_ref.shape)


def _choose_block_rows(B, D, itemsize, sublane, vmem_cap):
    """Largest batch tile whose double-buffered inputs fit a VMEM budget."""
    budget = int(0.4 * vmem_cap)  # 2 inputs x 2 buffers x TB x D x itemsize
    tb = (budget // (4 * D * itemsize)) // sublane * sublane
    tb = min(max(tb, sublane), 4096, _round_up(B, sublane))
    # Prefer >= 2 grid steps so v7x megacore can shard the 'parallel' axis.
    if B > 2 * sublane:
        tb = min(tb, _round_up(pl.cdiv(B, 2), sublane))
    return max(sublane, tb)


def contrastive_loss(
    output0, output1, target, *, margin, dist_metric="euclidean", block_rows=None
):
    """Pallas wrapper. output0/output1: (B, D); target: (B,) -> scalar loss."""
    B, D = output0.shape
    itemsize = jnp.dtype(output0.dtype).itemsize
    sublane = max(8, 32 // itemsize)  # dtype-aware: 8 f32, 16 bf16, 32 int8/fp8
    vmem_cap = _vmem_capacity_bytes()

    if block_rows is not None:
        tb = _round_up(max(int(block_rows), sublane), sublane)
    else:
        tb = _choose_block_rows(B, D, itemsize, sublane, vmem_cap)

    num_tiles = pl.cdiv(B, tb)
    t_col = target.astype(jnp.float32).reshape(B, 1)

    kernel = functools.partial(
        _contrastive_loss_kernel,
        margin=float(margin),
        dist_metric=dist_metric,
        batch=B,
        block_rows=tb,
    )

    cost = pl.CostEstimate(
        flops=(10 if dist_metric == "cosine" else 6) * B * D,
        transcendentals=2 * B,
        bytes_accessed=2 * B * D * itemsize + B * 4 + num_tiles * 8 * 128 * 4,
    )

    partials = pl.pallas_call(
        kernel,
        out_shape=jax.ShapeDtypeStruct((num_tiles, 8, 128), jnp.float32),
        grid_spec=pltpu.PrefetchScalarGridSpec(
            num_scalar_prefetch=0,
            grid=(num_tiles,),
            in_specs=[
                pl.BlockSpec((tb, D), lambda i: (i, 0)),  # x1 tile (full D)
                pl.BlockSpec((tb, D), lambda i: (i, 0)),  # x2 tile (full D)
                pl.BlockSpec((tb, 1), lambda i: (i, 0)),  # target column
            ],
            out_specs=pl.BlockSpec((1, 8, 128), lambda i: (i, 0, 0)),
        ),
        compiler_params=pltpu.CompilerParams(
            dimension_semantics=("parallel",),
            vmem_limit_bytes=int(vmem_cap * 3 // 4),
        ),
        cost_estimate=cost,
    )(output0, output1, t_col)

    # Each tile already excluded padded/ragged rows, so summing the per-tile
    # partials and dividing by the TRUE batch gives the exact mean.
    return jnp.sum(partials[:, 0, 0]) / B


def _reference_loss(output0, output1, target, *, margin, dist_metric):
    """Pure-JAX reference mirroring the PyTorch forward, for a sanity check."""
    t = target.astype(jnp.float32)
    x1 = output0.astype(jnp.float32)
    x2 = output1.astype(jnp.float32)
    if dist_metric == "euclidean":
        d = jnp.sqrt(jnp.sum((x1 - x2 + 1e-6) ** 2, axis=-1))
    else:
        dot = jnp.sum(x1 * x2, axis=-1)
        n1 = jnp.linalg.norm(x1, axis=-1)
        n2 = jnp.linalg.norm(x2, axis=-1)
        d = dot / jnp.maximum(n1 * n2, 1e-8)
    loss = 0.5 * (1 - t) * d**2 + 0.5 * t * jnp.maximum(margin - d, 0.0) ** 2
    return jnp.mean(loss)


if __name__ == "__main__":
    margin = 2.0
    key = jax.random.PRNGKey(0)

    ok = True
    # Case 1: small aligned shape, single tile.
    # Case 2: ragged shape (B=20, D=200) with a forced small tile (TB=8):
    #         full-D (200) blocks, 3-step grid, ragged last tile masked in-kernel.
    # Case 3: bf16 inputs to exercise dtype-aware (16-row) sublane rounding.
    cases = [
        dict(B=8, D=32, dtype=jnp.float32, block_rows=None),
        dict(B=20, D=200, dtype=jnp.float32, block_rows=8),
        dict(B=16, D=96, dtype=jnp.bfloat16, block_rows=None),
    ]
    for case in cases:
        B, D = case["B"], case["D"]
        key, k0, k1, k2 = jax.random.split(key, 4)
        output0 = jax.random.normal(k0, (B, D), dtype=jnp.float32).astype(case["dtype"])
        output1 = jax.random.normal(k1, (B, D), dtype=jnp.float32).astype(case["dtype"])
        target = jax.random.bernoulli(k2, 0.5, (B,)).astype(jnp.int32)

        for metric in ("euclidean", "cosine"):
            loss = contrastive_loss(
                output0,
                output1,
                target,
                margin=margin,
                dist_metric=metric,
                block_rows=case["block_rows"],
            )
            loss = jax.block_until_ready(loss)
            ref = _reference_loss(
                output0, output1, target, margin=margin, dist_metric=metric
            )
            if not jnp.allclose(loss, ref, rtol=1e-4, atol=1e-5):
                ok = False
                print(
                    f"MISMATCH (B={B}, D={D}, {case['dtype'].__name__}, {metric}): "
                    f"kernel={loss} ref={ref}"
                )

    if ok:
        print("KERNEL_OK")
</pallas_src>

<mosaic_0001>
module attributes {stable_mosaic.version = 11 : i64} {
  func.func @_contrastive_loss_kernel(%arg0: i32, %arg1: memref<8x32xf32, #tpu.memory_space<vmem>>, %arg2: memref<8x32xf32, #tpu.memory_space<vmem>>, %arg3: memref<8x1xf32, #tpu.memory_space<vmem>>, %arg4: memref<1x8x128xf32, #tpu.memory_space<vmem>>) attributes {dimension_semantics = [#tpu.dimension_semantics<parallel>], iteration_bounds = array<i64: 1>, scalar_prefetch = 0 : i64, scratch_operands = 0 : i64, tpu.core_type = #tpu.core_type<tc>, window_params = [{transform_indices = @transform_0, window_bounds = array<i64: 8, 32>}, {transform_indices = @transform_1, window_bounds = array<i64: 8, 32>}, {transform_indices = @transform_2, window_bounds = array<i64: 8, 1>}, {transform_indices = @transform_3, window_bounds = array<i64: 1, 8, 128>}]} {
    %c0 = arith.constant 0 : index
    %c0_0 = arith.constant 0 : index
    %0 = vector.load %arg1[%c0, %c0_0] : memref<8x32xf32, #tpu.memory_space<vmem>>, vector<8x32xf32>
    %c0_1 = arith.constant 0 : index
    %c0_2 = arith.constant 0 : index
    %1 = vector.load %arg2[%c0_1, %c0_2] : memref<8x32xf32, #tpu.memory_space<vmem>>, vector<8x32xf32>
    %c0_3 = arith.constant 0 : index
    %c0_4 = arith.constant 0 : index
    %2 = vector.load %arg3[%c0_3, %c0_4] : memref<8x1xf32, #tpu.memory_space<vmem>>, vector<8x1xf32>
    %3 = arith.subf %0, %1 : vector<8x32xf32>
    %cst = arith.constant 9.99999997E-7 : f32
    %4 = vector.broadcast %cst : f32 to vector<8x32xf32>
    %5 = arith.addf %3, %4 : vector<8x32xf32>
    %6 = arith.mulf %5, %5 : vector<8x32xf32>
    %cst_5 = arith.constant dense<0.000000e+00> : vector<8xf32>
    %7 = vector.multi_reduction <add>, %6, %cst_5 [1] : vector<8x32xf32> to vector<8xf32>
    %8 = vector.shape_cast %7 : vector<8xf32> to vector<8x1xf32>
    %9 = math.sqrt %8 : vector<8x1xf32>
    %cst_6 = arith.constant 2.000000e+00 : f32
    %10 = vector.broadcast %cst_6 : f32 to vector<8x1xf32>
    %11 = arith.subf %10, %9 : vector<8x1xf32>
    %cst_7 = arith.constant 0.000000e+00 : f32
    %12 = vector.broadcast %cst_7 : f32 to vector<8x1xf32>
    %13 = arith.maximumf %11, %12 : vector<8x1xf32>
    %cst_8 = arith.constant 1.000000e+00 : f32
    %14 = vector.broadcast %cst_8 : f32 to vector<8x1xf32>
    %15 = arith.subf %14, %2 : vector<8x1xf32>
    %cst_9 = arith.constant 5.000000e-01 : f32
    %16 = vector.broadcast %cst_9 : f32 to vector<8x1xf32>
    %17 = arith.mulf %16, %15 : vector<8x1xf32>
    %18 = arith.mulf %17, %8 : vector<8x1xf32>
    %cst_10 = arith.constant 5.000000e-01 : f32
    %19 = vector.broadcast %cst_10 : f32 to vector<8x1xf32>
    %20 = arith.mulf %19, %2 : vector<8x1xf32>
    %21 = arith.mulf %13, %13 : vector<8x1xf32>
    %22 = arith.mulf %20, %21 : vector<8x1xf32>
    %23 = arith.addf %18, %22 : vector<8x1xf32>
    %cst_11 = arith.constant dense<0.000000e+00> : vector<1xf32>
    %24 = vector.multi_reduction <add>, %23, %cst_11 [0] : vector<8x1xf32> to vector<1xf32>
    %25 = vector.shape_cast %24 : vector<1xf32> to vector<1x1xf32>
    %26 = vector.shape_cast %25 : vector<1x1xf32> to vector<1x1x1xf32>
    %27 = vector.shape_cast %26 : vector<1x1x1xf32> to vector<1x1x1xf32>
    %28 = vector.broadcast %27 : vector<1x1x1xf32> to vector<1x8x128xf32>
    %c0_12 = arith.constant 0 : index
    %c0_13 = arith.constant 0 : index
    %c0_14 = arith.constant 0 : index
    %29 = vector.load %arg4[%c0_12, %c0_13, %c0_14] : memref<1x8x128xf32, #tpu.memory_space<vmem>>, vector<1x8x128xf32>
    tpu.vector_store %arg4[%c0_12, %c0_13, %c0_14], %28 {strides = array<i32>} : memref<1x8x128xf32, #tpu.memory_space<vmem>>, vector<1x8x128xf32>,
    return
  }
  func.func @transform_0(%arg0: i32) -> (i32, i32) {
    %c0_i32 = arith.constant 0 : i32
    %c0_i32_0 = arith.constant 0 : i32
    return %arg0, %c0_i32 : i32, i32
  }
  func.func @transform_1(%arg0: i32) -> (i32, i32) {
    %c0_i32 = arith.constant 0 : i32
    %c0_i32_0 = arith.constant 0 : i32
    return %arg0, %c0_i32 : i32, i32
  }
  func.func @transform_2(%arg0: i32) -> (i32, i32) {
    %c0_i32 = arith.constant 0 : i32
    %c0_i32_0 = arith.constant 0 : i32
    return %arg0, %c0_i32 : i32, i32
  }
  func.func @transform_3(%arg0: i32) -> (i32, i32, i32) {
    %c0_i32 = arith.constant 0 : i32
    %c0_i32_0 = arith.constant 0 : i32
    %c0_i32_1 = arith.constant 0 : i32
    return %arg0, %c0_i32, %c0_i32_0 : i32, i32, i32
  }
}

</mosaic_0001>

<llo_original>
// kernel: tpu_custom_call.1
$region0: #{tpu_custom_call.1}
  #allocation0 [shape = 'u32[]', space=smem, size = 0x4, offset = 0x4, fixed_abs, tag = 'smem constant byte address 0x4 - core index']
  #allocation1 [shape = 'u32[72,128]{1,0:T(1,128)}', space=vmem, size = 0x9000, scoped, tag = 'internal scratch']
  %s0 = inlined_call_operand.vmem [shape: f32[8,32], index: 0, kind: input, shape index: {}]
  %s1 = inlined_call_operand.hbm [shape: f32[8,32], index: 1, kind: input, shape index: {}]
  %s2 = inlined_call_operand.vmem [shape: f32[8,1], index: 2, kind: input, shape index: {}]
  %s3 = inlined_call_operand.hbm [shape: f32[1,8,128], index: 3, kind: output, shape index: {}]
  %s4 = sld [smem:[#allocation0]]
  $region26: #{tpu_custom_call.1} parent=0
    _
  %s6 = ssub.s32 1, %s4
  %s7 = scalar_select 0, %s6, %s4
  $region1: #{tpu_custom_call.1} parent=0
    #allocation2 [shape = 'u8[4096]{0}', space=vmem, size = 0x1000, scoped, tag = 'input window, operand 1, single buffered']
    #allocation3 [shape = 's32[1]{0}', space=sflag, size = 0x4, scoped, tag = 'scoped memory for tpu_custom_call.1']
    #allocation4 [shape = 's32[1]{0}', space=sflag, size = 0x4, scoped, tag = 'scoped memory for tpu_custom_call.1']
    #allocation5 [shape = 'u8[4096]{0}', space=vmem, size = 0x1000, scoped, tag = 'output window, operand 0, single buffered']
    %8 = vsyncpa [#allocation3], 0
    %9 = vsyncpa [#allocation4], 0
    // Predicated region
    $region2: #{tpu_custom_call.1} parent=1 // pred_check
      _
    $region3: #{tpu_custom_call.1} parent=1 // pred_check_branch
      %11 = sbr.rel (0) target = $region5
    $region4: #{tpu_custom_call.1} parent=1 // pred_region
      _
    $region5: #{tpu_custom_call.1} parent=1 // pred_fallthru
      _
    // Predicated region
    $region6: #{tpu_custom_call.1} parent=1 // pred_check
      _
    $region7: #{tpu_custom_call.1} parent=1 // pred_check_branch
      %13 = sbr.rel (0) target = $region9
    $region8: #{tpu_custom_call.1} parent=1 // pred_region
      %15 = vsyncadd [#allocation3], 0
      %s17 = sshll.u32 %s1, 4
      %s18 = int_to_ptr.hbm [resolvable:$true] %s17
      %s19 = sshll.u32 [#allocation2], 4
      %s20 = int_to_ptr.vmem [resolvable:$true] %s19
      %22 = dma.hbm_to_vmem [thread:$0]  %s18, 128, %s20, [#allocation3]
    $region9: #{tpu_custom_call.1} parent=1 // pred_fallthru
      _
    // Predicated region
    $region10: #{tpu_custom_call.1} parent=1 // pred_check
      _
    $region11: #{tpu_custom_call.1} parent=1 // pred_check_branch
      %24 = sbr.rel (0) target = $region13
    $region12: #{tpu_custom_call.1} parent=1 // pred_region
      _
    $region13: #{tpu_custom_call.1} parent=1 // pred_fallthru
      _
    // Predicated region
    $region14: #{tpu_custom_call.1} parent=1 // pred_check
      _
    $region15: #{tpu_custom_call.1} parent=1 // pred_check_branch
      %26 = sbr.rel (0) target = $region17
    $region16: #{tpu_custom_call.1} parent=1 // pred_region
      %28 = dma.done [#allocation3], 128
    $region17: #{tpu_custom_call.1} parent=1 // pred_fallthru
      _
    %v29 = vld [vmem:[%s0] sm:$0xff]
    %v30 = vld [vmem:[#allocation2] sm:$0xff]
    %v31 = vld [vmem:[%s2] sm:$0xff]
    %v32 = vsub.f32 %v29, %v30
    %v33 = vadd.f32 %v32, 1e-06
    %v34 = vmul.f32 %v33, %v33
    %vm35 = vcmask 261120
    %v36 = vsel %vm35, %v34, 0.0
    %37 = vadd.xlane.f32.xlu0 %v36
    %v38 = vpop.xlane.xlu0 %37
    %v39 = vrsqrt.pop %v38
    %v40 = vmul.f32 %v39, %v38
    %v41 = vmul.f32 %v40, %v39
    %v42 = vmul.f32 0.5, %v41
    %v43 = vsub.f32 1.5, %v42
    %v44 = vmul.f32 %v39, %v43
    %v45 = vmul.f32 %v38, %v44
    %vm46 = vcmp.eq.f32.partialorder %v38, inf
    %v47 = vsel %vm46, %v38, %v45
    %vm48 = vcmp.eq.f32.partialorder %v38, 0.0
    %v49 = vand.u32 %v38, 2147483648
    %v50 = vsel %vm48, %v49, %v47
    %v51 = vsub.f32 2.0, %v50
    %v52 = vmax.f32 %v51, 0.0
    %v53 = vsub.f32 1.0, %v31
    %v54 = vmul.f32 %v53, 0.5
    %v55 = vmul.f32 %v54, %v38
    %v56 = vmul.f32 %v31, 0.5
    %v57 = vmul.f32 %v52, %v52
    %v58 = vmul.f32 %v56, %v57
    %v59 = vadd.f32 %v55, %v58
    %vm60 = vcmask 7168
    %v61 = vsel %vm60, %v59, 0.0
    %v62 = vrot.slane %v61, 4
    %v63 = vadd.f32 %v61, %v62
    %v64 = vrot.slane %v63, 2
    %v65 = vadd.f32 %v63, %v64
    %v66 = vrot.slane %v65, 1
    %v67 = vadd.f32 %v65, %v66
    %69 = vset.pattern.permute.xlu0 0
    %70 = vperm.xlu0 %69, %v67
    %v71 = vpop.permute.xlu0 %70
    %73 = vst [vmem:[#allocation5] sm:$0xff] %v71
    // Predicated region
    $region18: #{tpu_custom_call.1} parent=1 // pred_check
      _
    $region19: #{tpu_custom_call.1} parent=1 // pred_check_branch
      %75 = sbr.rel (0) target = $region21
    $region20: #{tpu_custom_call.1} parent=1 // pred_region
      %77 = vsyncadd [#allocation4], 0
      %s79 = sshll.u32 [#allocation5], 4
      %s80 = int_to_ptr.vmem [resolvable:$true] %s79
      %s81 = sshll.u32 %s3, 4
      %s82 = int_to_ptr.hbm [resolvable:$true] %s81
      %84 = dma.vmem_to_hbm [thread:$0]  %s80, 128, %s82, [#allocation4]
    $region21: #{tpu_custom_call.1} parent=1 // pred_fallthru
      _
    // Predicated region
    $region22: #{tpu_custom_call.1} parent=1 // pred_check
      _
    $region23: #{tpu_custom_call.1} parent=1 // pred_check_branch
      %86 = sbr.rel (0) target = $region25
    $region24: #{tpu_custom_call.1} parent=1 // pred_region
      %88 = dma.done [#allocation4], 128
    $region25: #{tpu_custom_call.1} parent=1 // pred_fallthru
      _
    %89 = vsyncpa [#allocation3], 1
    %90 = vsyncpa [#allocation4], 1

</llo_original>
